<compile_context>
chip_gen: v7x
topology: tpu7x:2x2x1
jax: 0.10.0
libtpu: 0.0.40
codegen_flags: <defaults>
</compile_context>

<pallas_src>
import functools
import math

import jax
import jax.numpy as jnp
from jax import lax
from jax.experimental import pallas as pl
from jax.experimental.pallas import tpu as pltpu


def _gram_accum_kernel(xr_ref, xc_ref, out_ref, *, inv_temp, tm, tn):
    """Grid = (column tiles i [parallel], row tiles k [reduction, inner]).

    out_ref is a (2, tn) f32 accumulator resident across k:
      row 0: column sums of exp(S/T) (diag zeroed, pad rows NOT masked here),
      row 1: sub-diagonal values E[j+1, j].
    """
    i = pl.program_id(0)   # column tile (parallel)
    k = pl.program_id(1)   # row tile (reduction, innermost)

    @pl.when(k == 0)
    def _init():
        out_ref[...] = jnp.zeros_like(out_ref)

    # bf16 pre-normalized operands straight into the MXU, f32 accumulation.
    # Feature axes of both operands are contracted, so no transpose copy.
    s = lax.dot_general(
        xr_ref[...], xc_ref[...],
        dimension_numbers=(((1,), (1,)), ((), ())),
        preferred_element_type=jnp.float32)                  # (tm, tn) f32
    e = jnp.exp(s * inv_temp)                                # f32 exp on the EUP

    r0 = k * tm                                              # global first row
    c0 = i * tn                                              # global first col
    # Tile touches the {row - col in {0, 1}} band (diag and/or sub-diagonal)?
    near_band = (r0 <= c0 + tn) & (c0 <= r0 + tm - 1)

    @pl.when(near_band)
    def _band_tile():
        grow = r0 + lax.broadcasted_iota(jnp.int32, (tm, tn), 0)
        gcol = c0 + lax.broadcasted_iota(jnp.int32, (tm, tn), 1)
        em = jnp.where(grow != gcol, e, 0.0)                 # zero the diagonal
        out_ref[0:1, :] += jnp.sum(em, axis=0, keepdims=True)
        out_ref[1:2, :] += jnp.sum(jnp.where(grow == gcol + 1, em, 0.0),
                                   axis=0, keepdims=True)

    @pl.when(jnp.logical_not(near_band))
    def _interior_tile():
        # No diagonal / sub-diagonal elements here: just accumulate colsums.
        out_ref[0:1, :] += jnp.sum(e, axis=0, keepdims=True)


def ls_hatcl_loss(features, temperature=0.5, tm=256, tn=512):
    """features: (N, D) float array -> scalar loss (float32).

    tm: streamed row tile, tn: resident column tile; both multiples of 128.
    Defaults are safe on v5e/v6e/v7x; v5e/v6e can use tm=512, tn=1024.
    """
    n, d = features.shape
    if n < 3:
        raise ValueError("LS_HATCL_LOSS needs at least 3 samples")

    # --- Prologue: L2-normalize once in f32 (== torch F.normalize eps=1e-12),
    # cast to bf16 so the Gram kernel streams half the bytes and does no
    # per-step normalization work.
    x = features.astype(jnp.float32)
    xn = x * lax.rsqrt(jnp.maximum(jnp.sum(x * x, axis=-1, keepdims=True), 1e-24))
    xb = xn.astype(jnp.bfloat16)

    # --- Tile selection (clamped for small N).
    n128 = pl.cdiv(n, 128) * 128
    tm = max(128, min(int(tm), n128))
    tn = max(128, min(int(tn), n128))
    if tm % 128 != 0 or tn % 128 != 0:
        raise ValueError("tm and tn must be multiples of 128")
    step = math.lcm(tm, tn)
    n_pad = pl.cdiv(n, step) * step
    if n_pad != n:
        # Pad rows are exact bf16 zeros -> each contributes exactly exp(0)=1
        # per column; that exact constant is subtracted in the epilogue.
        xb = jnp.pad(xb, ((0, n_pad - n), (0, 0)))

    grid = (n_pad // tn, n_pad // tm)      # (column tiles, row tiles)
    inv_temp = 1.0 / float(temperature)

    # VMEM budget: double-buffered bf16 inputs + f32 output block + temporaries.
    vmem_bytes = (2 * (tm + tn) * d * 2
                  + 2 * (2 * tn) * 4
                  + 8 * tm * tn * 4)
    vmem_limit = int(min(128 * 1024 * 1024,
                         max(32 * 1024 * 1024, vmem_bytes + (4 << 20))))

    out = pl.pallas_call(
        functools.partial(_gram_accum_kernel, inv_temp=inv_temp, tm=tm, tn=tn),
        out_shape=jax.ShapeDtypeStruct((2, n_pad), jnp.float32),
        grid=grid,
        in_specs=[
            pl.BlockSpec((tm, d), lambda i, k: (k, 0)),   # streamed row block
            pl.BlockSpec((tn, d), lambda i, k: (i, 0)),   # column block, resident over k
        ],
        out_specs=pl.BlockSpec((2, tn), lambda i, k: (0, i)),
        compiler_params=pltpu.CompilerParams(
            dimension_semantics=("parallel", "arbitrary"),
            vmem_limit_bytes=vmem_limit),
    )(xb, xb)

    # --- O(N) epilogue in plain jnp (fused by XLA; no second kernel launch).
    pad_rows = jnp.float32(n_pad - n)       # exact contribution of zero pad rows
    colsum = out[0, :n] - pad_rows          # column sums of E (diag zeroed)
    sub = out[1, :n]                        # sub[j] = E[j+1, j] (valid for j <= n-2)
    num = sub[:n - 2] + sub[1:n - 1]
    den = (colsum[:n - 2] - sub[:n - 2]
           + colsum[1:n - 1] - (sub[1:n - 1] + sub[:n - 2]))
    return -jnp.mean(jnp.log(num / den))


def ls_hatcl_loss_ref(features, temperature=0.5):
    """Pure-JAX f32 reference mirroring the PyTorch module exactly."""
    x = features.astype(jnp.float32)
    xn = x / jnp.maximum(jnp.linalg.norm(x, axis=-1, keepdims=True), 1e-12)
    e = jnp.exp((xn @ xn.T) / temperature)
    e = e - jnp.diag(jnp.diag(e))
    ld = jnp.diagonal(e, offset=-1)
    num = ld[1:] + ld[:-1]
    den = (jnp.sum(e[:, :-2], axis=0) - ld[:-1]
           + (jnp.sum(e[:, 1:-1], axis=0) - (ld[1:] + ld[:-1])))
    return -jnp.mean(jnp.log(num / den))


def ls_hatcl_loss_ref_matched(features, temperature=0.5):
    """Reference mirroring the kernel's precision choices (bf16 Gram operands)."""
    x = features.astype(jnp.float32)
    xn = x * lax.rsqrt(jnp.maximum(jnp.sum(x * x, axis=-1, keepdims=True), 1e-24))
    xb = xn.astype(jnp.bfloat16)
    s = lax.dot_general(xb, xb, (((1,), (1,)), ((), ())),
                        preferred_element_type=jnp.float32)
    e = jnp.exp(s / temperature)
    e = jnp.where(jnp.eye(x.shape[0], dtype=bool), 0.0, e)
    ld = jnp.diagonal(e, offset=-1)
    num = ld[1:] + ld[:-1]
    den = (jnp.sum(e[:, :-2], axis=0) - ld[:-1]
           + (jnp.sum(e[:, 1:-1], axis=0) - (ld[1:] + ld[:-1])))
    return -jnp.mean(jnp.log(num / den))


if __name__ == "__main__":
    key = jax.random.PRNGKey(0)
    k1, k2, k3, k4 = jax.random.split(key, 4)
    temperature = 0.5

    # (features, tile overrides) — small deterministic shapes that exercise:
    # a tiny single-tile case, multi-tile with the sub-diagonal crossing a
    # tile boundary, padded (non-multiple) N, and rectangular tiles + padding.
    cases = [
        (jax.random.normal(k1, (8, 32), dtype=jnp.float32), dict()),
        (jax.random.normal(k2, (256, 32), dtype=jnp.float32), dict(tm=128, tn=128)),
        (jax.random.normal(k3, (200, 32), dtype=jnp.float32), dict(tm=128, tn=128)),
        (jax.random.normal(k4, (384, 64), dtype=jnp.float32), dict(tm=128, tn=256)),
    ]

    for feats, tiles in cases:
        loss = jax.block_until_ready(ls_hatcl_loss(feats, temperature, **tiles))
        ref_matched = jax.block_until_ready(ls_hatcl_loss_ref_matched(feats, temperature))
        ref_exact = jax.block_until_ready(ls_hatcl_loss_ref(feats, temperature))
        assert jnp.isfinite(loss), (feats.shape, loss)
        # Tight check vs a reference using the same (bf16-into-MXU) precision.
        assert jnp.allclose(loss, ref_matched, rtol=1e-3, atol=1e-3), \
            (feats.shape, float(loss), float(ref_matched))
        # Looser check vs the exact f32 PyTorch-equivalent reference.
        assert jnp.allclose(loss, ref_exact, rtol=2e-2, atol=2e-2), \
            (feats.shape, float(loss), float(ref_exact))

    print("KERNEL_OK")
</pallas_src>

<mosaic_0001>
module attributes {stable_mosaic.version = 11 : i64} {
  func.func @_gram_accum_kernel(%arg0: i32, %arg1: i32, %arg2: memref<128x32xbf16, #tpu.memory_space<vmem>>, %arg3: memref<128x32xbf16, #tpu.memory_space<vmem>>, %arg4: memref<2x128xf32, #tpu.memory_space<vmem>>) attributes {dimension_semantics = [#tpu.dimension_semantics<parallel>, #tpu.dimension_semantics<arbitrary>], iteration_bounds = array<i64: 1, 1>, scalar_prefetch = 0 : i64, scratch_operands = 0 : i64, tpu.core_type = #tpu.core_type<tc>, window_params = [{transform_indices = @transform_0, window_bounds = array<i64: 128, 32>}, {transform_indices = @transform_1, window_bounds = array<i64: 128, 32>}, {transform_indices = @transform_2, window_bounds = array<i64: 2, 128>}]} {
    %c0_i32 = arith.constant 0 : i32
    %0 = arith.cmpi eq, %arg1, %c0_i32 : i32
    %1 = arith.extui %0 : i1 to i32
    %c0_i32_0 = arith.constant 0 : i32
    %2 = arith.cmpi ne, %1, %c0_i32_0 : i32
    scf.if %2 {
      %cst_10 = arith.constant 0.000000e+00 : f32
      %22 = vector.broadcast %cst_10 : f32 to vector<2x128xf32>
      %c0_11 = arith.constant 0 : index
      %c0_12 = arith.constant 0 : index
      %23 = vector.load %arg4[%c0_11, %c0_12] : memref<2x128xf32, #tpu.memory_space<vmem>>, vector<2x128xf32>
      tpu.vector_store %arg4[%c0_11, %c0_12], %22 {strides = array<i32>} : memref<2x128xf32, #tpu.memory_space<vmem>>, vector<2x128xf32>,
    } else {
    }
    %c0 = arith.constant 0 : index
    %c0_1 = arith.constant 0 : index
    %3 = vector.load %arg2[%c0, %c0_1] : memref<128x32xbf16, #tpu.memory_space<vmem>>, vector<128x32xbf16>
    %c0_2 = arith.constant 0 : index
    %c0_3 = arith.constant 0 : index
    %4 = vector.load %arg3[%c0_2, %c0_3] : memref<128x32xbf16, #tpu.memory_space<vmem>>, vector<128x32xbf16>
    %cst = arith.constant dense<0.000000e+00> : vector<128x128xf32>
    %5 = tpu.matmul %3, %4, %cst {dimension_numbers = #tpu.dot_dimension_numbers<[1], [1], [0], [0], [0, 0, 1, 0], [], []>} : vector<128x32xbf16>, vector<128x32xbf16>, vector<128x128xf32> -> vector<128x128xf32>
    %cst_4 = arith.constant 2.000000e+00 : f32
    %6 = vector.broadcast %cst_4 : f32 to vector<128x128xf32>
    %7 = arith.mulf %5, %6 : vector<128x128xf32>
    %8 = math.exp %7 : vector<128x128xf32>
    %c128_i32 = arith.constant 128 : i32
    %9 = arith.muli %arg1, %c128_i32 : i32
    %c128_i32_5 = arith.constant 128 : i32
    %10 = arith.muli %arg0, %c128_i32_5 : i32
    %c128_i32_6 = arith.constant 128 : i32
    %11 = arith.addi %10, %c128_i32_6 : i32
    %12 = arith.cmpi sle, %9, %11 : i32
    %c128_i32_7 = arith.constant 128 : i32
    %13 = arith.addi %9, %c128_i32_7 : i32
    %c1_i32 = arith.constant 1 : i32
    %14 = arith.subi %13, %c1_i32 : i32
    %15 = arith.cmpi sle, %10, %14 : i32
    %16 = arith.andi %12, %15 : i1
    %17 = arith.extui %16 : i1 to i32
    %c0_i32_8 = arith.constant 0 : i32
    %18 = arith.cmpi ne, %17, %c0_i32_8 : i32
    scf.if %18 {
      %22 = tpu.iota {dimensions = array<i32: 0>} : vector<128x128xi32>
      %23 = vector.broadcast %9 : i32 to vector<128x128xi32>
      %24 = arith.addi %23, %22 : vector<128x128xi32>
      %25 = tpu.iota {dimensions = array<i32: 1>} : vector<128x128xi32>
      %26 = vector.broadcast %10 : i32 to vector<128x128xi32>
      %27 = arith.addi %26, %25 : vector<128x128xi32>
      %28 = arith.cmpi ne, %24, %27 : vector<128x128xi32>
      %cst_10 = arith.constant 0.000000e+00 : f32
      %29 = vector.broadcast %cst_10 : f32 to vector<128x128xf32>
      %30 = arith.select %28, %8, %29 : vector<128x128xi1>, vector<128x128xf32>
      %c0_11 = arith.constant 0 : index
      %c0_12 = arith.constant 0 : index
      %31 = vector.load %arg4[%c0_11, %c0_12] : memref<2x128xf32, #tpu.memory_space<vmem>>, vector<1x128xf32>
      %cst_13 = arith.constant dense<0.000000e+00> : vector<128xf32>
      %32 = vector.multi_reduction <add>, %30, %cst_13 [0] : vector<128x128xf32> to vector<128xf32>
      %33 = vector.shape_cast %32 : vector<128xf32> to vector<1x128xf32>
      %34 = arith.addf %31, %33 : vector<1x128xf32>
      %c0_14 = arith.constant 0 : index
      %c0_15 = arith.constant 0 : index
      %35 = vector.load %arg4[%c0_14, %c0_15] : memref<2x128xf32, #tpu.memory_space<vmem>>, vector<1x128xf32>
      tpu.vector_store %arg4[%c0_14, %c0_15], %34 {strides = array<i32>} : memref<2x128xf32, #tpu.memory_space<vmem>>, vector<1x128xf32>,
      %c1 = arith.constant 1 : index
      %c0_16 = arith.constant 0 : index
      %36 = vector.load %arg4[%c1, %c0_16] : memref<2x128xf32, #tpu.memory_space<vmem>>, vector<1x128xf32>
      %c1_i32_17 = arith.constant 1 : i32
      %37 = vector.broadcast %c1_i32_17 : i32 to vector<128x128xi32>
      %38 = arith.addi %27, %37 : vector<128x128xi32>
      %39 = arith.cmpi eq, %24, %38 : vector<128x128xi32>
      %cst_18 = arith.constant 0.000000e+00 : f32
      %40 = vector.broadcast %cst_18 : f32 to vector<128x128xf32>
      %41 = arith.select %39, %30, %40 : vector<128x128xi1>, vector<128x128xf32>
      %cst_19 = arith.constant dense<0.000000e+00> : vector<128xf32>
      %42 = vector.multi_reduction <add>, %41, %cst_19 [0] : vector<128x128xf32> to vector<128xf32>
      %43 = vector.shape_cast %42 : vector<128xf32> to vector<1x128xf32>
      %44 = arith.addf %36, %43 : vector<1x128xf32>
      %c1_20 = arith.constant 1 : index
      %c0_21 = arith.constant 0 : index
      %45 = vector.load %arg4[%c1_20, %c0_21] : memref<2x128xf32, #tpu.memory_space<vmem>>, vector<1x128xf32>
      tpu.vector_store %arg4[%c1_20, %c0_21], %44 {strides = array<i32>} : memref<2x128xf32, #tpu.memory_space<vmem>>, vector<1x128xf32>,
    } else {
    }
    %true = arith.constant true
    %19 = arith.xori %16, %true : i1
    %20 = arith.extui %19 : i1 to i32
    %c0_i32_9 = arith.constant 0 : i32
    %21 = arith.cmpi ne, %20, %c0_i32_9 : i32
    scf.if %21 {
      %c0_10 = arith.constant 0 : index
      %c0_11 = arith.constant 0 : index
      %22 = vector.load %arg4[%c0_10, %c0_11] : memref<2x128xf32, #tpu.memory_space<vmem>>, vector<1x128xf32>
      %cst_12 = arith.constant dense<0.000000e+00> : vector<128xf32>
      %23 = vector.multi_reduction <add>, %8, %cst_12 [0] : vector<128x128xf32> to vector<128xf32>
      %24 = vector.shape_cast %23 : vector<128xf32> to vector<1x128xf32>
      %25 = arith.addf %22, %24 : vector<1x128xf32>
      %c0_13 = arith.constant 0 : index
      %c0_14 = arith.constant 0 : index
      %26 = vector.load %arg4[%c0_13, %c0_14] : memref<2x128xf32, #tpu.memory_space<vmem>>, vector<1x128xf32>
      tpu.vector_store %arg4[%c0_13, %c0_14], %25 {strides = array<i32>} : memref<2x128xf32, #tpu.memory_space<vmem>>, vector<1x128xf32>,
    } else {
    }
    return
  }
  func.func @transform_0(%arg0: i32, %arg1: i32) -> (i32, i32) {
    %c0_i32 = arith.constant 0 : i32
    %c0_i32_0 = arith.constant 0 : i32
    return %arg1, %c0_i32 : i32, i32
  }
  func.func @transform_1(%arg0: i32, %arg1: i32) -> (i32, i32) {
    %c0_i32 = arith.constant 0 : i32
    %c0_i32_0 = arith.constant 0 : i32
    return %arg0, %c0_i32 : i32, i32
  }
  func.func @transform_2(%arg0: i32, %arg1: i32) -> (i32, i32) {
    %c0_i32 = arith.constant 0 : i32
    %c0_i32_0 = arith.constant 0 : i32
    return %c0_i32, %arg0 : i32, i32
  }
}

</mosaic_0001>

<llo_original>
// kernel: tpu_custom_call.1
$region0: #{tpu_custom_call.1}
  #allocation0 [shape = 'u32[]', space=smem, size = 0x4, offset = 0x4, fixed_abs, tag = 'smem constant byte address 0x4 - core index']
  #allocation1 [shape = 'u32[144,128]{1,0:T(1,128)}', space=vmem, size = 0x12000, scoped, tag = 'internal scratch']
  %s0 = inlined_call_operand.vmem [shape: bf16[128,32], index: 0, kind: input, shape index: {}]
  %s1 = inlined_call_operand.vmem [shape: bf16[128,32], index: 1, kind: input, shape index: {}]
  %s2 = inlined_call_operand.hbm [shape: f32[2,128], index: 2, kind: output, shape index: {}]
  %s3 = sld [smem:[#allocation0]]
  $region30: #{tpu_custom_call.1} parent=0
    _
  %s5 = ssub.s32 1, %s3
  %s6 = scalar_select 0, %s5, %s3
  $region1: #{tpu_custom_call.1} parent=0
    #allocation2 [shape = 'u8[1024]{0}', space=vmem, size = 0x400, scoped, tag = 'output window, operand 0, single buffered']
    #allocation3 [shape = 's32[1]{0}', space=sflag, size = 0x4, scoped, tag = 'scoped memory for tpu_custom_call.1']
    %7 = vsyncpa [#allocation3], 0
    // Predicated region
    $region2: #{tpu_custom_call.1} parent=1 // pred_check
      _
    $region3: #{tpu_custom_call.1} parent=1 // pred_check_branch
      %9 = sbr.rel (0) target = $region5
    $region4: #{tpu_custom_call.1} parent=1 // pred_region
      _
    $region5: #{tpu_custom_call.1} parent=1 // pred_fallthru
      _
    // Predicated region
    $region6: #{tpu_custom_call.1} parent=1 // pred_check
      _
    $region7: #{tpu_custom_call.1} parent=1 // pred_check_branch
      %11 = sbr.rel (0) target = $region9
    $region8: #{tpu_custom_call.1} parent=1 // pred_region
      _
    $region9: #{tpu_custom_call.1} parent=1 // pred_fallthru
      _
    %p13 = scmp.eq.s32.totalorder 0, 0
    // Predicated region
    $region10: #{tpu_custom_call.1} parent=1 // pred_check
      %p14 = pneg %p13
    $region11: #{tpu_custom_call.1} parent=1 // pred_check_branch
      %16 = sbr.rel (%p14) target = $region13
    $region12: #{tpu_custom_call.1} parent=1 // pred_region
      %17 = vst [vmem:[#allocation2] sm:$0x3] 0.0
    $region13: #{tpu_custom_call.1} parent=1 // pred_fallthru
      _
    %v18 = vld [vmem:[%s0] sm:$0xf]
    %v19 = vld [vmem:[%s0 + $0x4] sm:$0xf]
    %v20 = vld [vmem:[%s0 + $0x8] sm:$0xf]
    %v21 = vld [vmem:[%s0 + $0xc] sm:$0xf]
    %v22 = vld [vmem:[%s0 + $0x10] sm:$0xf]
    %v23 = vld [vmem:[%s0 + $0x14] sm:$0xf]
    %v24 = vld [vmem:[%s0 + $0x18] sm:$0xf]
    %v25 = vld [vmem:[%s0 + $0x1c] sm:$0xf]
    %v26 = vld [vmem:[%s0 + $0x20] sm:$0xf]
    %v27 = vld [vmem:[%s0 + $0x24] sm:$0xf]
    %v28 = vld [vmem:[%s0 + $0x28] sm:$0xf]
    %v29 = vld [vmem:[%s0 + $0x2c] sm:$0xf]
    %v30 = vld [vmem:[%s0 + $0x30] sm:$0xf]
    %v31 = vld [vmem:[%s0 + $0x34] sm:$0xf]
    %v32 = vld [vmem:[%s0 + $0x38] sm:$0xf]
    %v33 = vld [vmem:[%s0 + $0x3c] sm:$0xf]
    %v34 = vld [vmem:[%s1] sm:$0xf]
    %v35 = vld [vmem:[%s1 + $0x4] sm:$0xf]
    %v36 = vld [vmem:[%s1 + $0x8] sm:$0xf]
    %v37 = vld [vmem:[%s1 + $0xc] sm:$0xf]
    %v38 = vld [vmem:[%s1 + $0x10] sm:$0xf]
    %v39 = vld [vmem:[%s1 + $0x14] sm:$0xf]
    %v40 = vld [vmem:[%s1 + $0x18] sm:$0xf]
    %v41 = vld [vmem:[%s1 + $0x1c] sm:$0xf]
    %v42 = vld [vmem:[%s1 + $0x20] sm:$0xf]
    %v43 = vld [vmem:[%s1 + $0x24] sm:$0xf]
    %v44 = vld [vmem:[%s1 + $0x28] sm:$0xf]
    %v45 = vld [vmem:[%s1 + $0x2c] sm:$0xf]
    %v46 = vld [vmem:[%s1 + $0x30] sm:$0xf]
    %v47 = vld [vmem:[%s1 + $0x34] sm:$0xf]
    %v48 = vld [vmem:[%s1 + $0x38] sm:$0xf]
    %v49 = vld [vmem:[%s1 + $0x3c] sm:$0xf]
    %v66 = vunpack.c.l.b16 %v18
    %v67 = vunpack.c.l.b16 %v19
    %v68 = vunpack.c.l.b16 %v20
    %v69 = vunpack.c.l.b16 %v21
    %v70 = vunpack.c.l.b16 %v22
    %v71 = vunpack.c.l.b16 %v23
    %v72 = vunpack.c.l.b16 %v24
    %v73 = vunpack.c.l.b16 %v25
    %v74 = vunpack.c.l.b16 %v26
    %v75 = vunpack.c.l.b16 %v27
    %v76 = vunpack.c.l.b16 %v28
    %v77 = vunpack.c.l.b16 %v29
    %v78 = vunpack.c.l.b16 %v30
    %v79 = vunpack.c.l.b16 %v31
    %v80 = vunpack.c.l.b16 %v32
    %v81 = vunpack.c.l.b16 %v33
    %v82 = vpack.c.b16 %v67, %v66
    %v83 = vpack.c.b16 %v69, %v68
    %v84 = vpack.c.b16 %v71, %v70
    %v85 = vpack.c.b16 %v73, %v72
    %v86 = vpack.c.b16 %v75, %v74
    %v87 = vpack.c.b16 %v77, %v76
    %v88 = vpack.c.b16 %v79, %v78
    %v89 = vpack.c.b16 %v81, %v80
    %v106 = vunpack.c.l.b16 %v34
    %v107 = vunpack.c.l.b16 %v35
    %v108 = vunpack.c.l.b16 %v36
    %v109 = vunpack.c.l.b16 %v37
    %v110 = vunpack.c.l.b16 %v38
    %v111 = vunpack.c.l.b16 %v39
    %v112 = vunpack.c.l.b16 %v40
    %v113 = vunpack.c.l.b16 %v41
    %v114 = vunpack.c.l.b16 %v42
    %v115 = vunpack.c.l.b16 %v43
    %v116 = vunpack.c.l.b16 %v44
    %v117 = vunpack.c.l.b16 %v45
    %v118 = vunpack.c.l.b16 %v46
    %v119 = vunpack.c.l.b16 %v47
    %v120 = vunpack.c.l.b16 %v48
    %v121 = vunpack.c.l.b16 %v49
    %v122 = vpack.c.b16 %v107, %v106
    %v123 = vpack.c.b16 %v109, %v108
    %v124 = vpack.c.b16 %v111, %v110
    %v125 = vpack.c.b16 %v113, %v112
    %v126 = vpack.c.b16 %v115, %v114
    %v127 = vpack.c.b16 %v117, %v116
    %v128 = vpack.c.b16 %v119, %v118
    %v129 = vpack.c.b16 %v121, %v120
    %vm130 = vcmask 261120
    %v132 = vsel %vm130, %v82, 0
    %v135 = vsel %vm130, %v83, 0
    %v138 = vsel %vm130, %v84, 0
    %v141 = vsel %vm130, %v85, 0
    %v144 = vsel %vm130, %v86, 0
    %v147 = vsel %vm130, %v87, 0
    %v150 = vsel %vm130, %v88, 0
    %v153 = vsel %vm130, %v89, 0
    %v156 = vsel %vm130, %v122, 0
    %v159 = vsel %vm130, %v123, 0
    %v162 = vsel %vm130, %v124, 0
    %v165 = vsel %vm130, %v125, 0
    %v168 = vsel %vm130, %v126, 0
    %v171 = vsel %vm130, %v127, 0
    %v174 = vsel %vm130, %v128, 0
    %v177 = vsel %vm130, %v129, 0
    %179 = vmatprep.subr.bf16.mxu0 0
    %180 = vmatpush1.bf16.xpose.msra.mxu0 %v156
    %181 = vmatprep.subr.bf16.mxu0 0
    %182 = vmatpush1.bf16.xpose.msra.mxu0 %v159
    %183 = vmatprep.subr.bf16.mxu0 0
    %184 = vmatpush1.bf16.xpose.msra.mxu0 %v162
    %185 = vmatprep.subr.bf16.mxu0 0
    %186 = vmatpush1.bf16.xpose.msra.mxu0 %v165
    %187 = vmatprep.subr.bf16.mxu0 0
    %188 = vmatpush1.bf16.xpose.msra.mxu0 %v168
    %189 = vmatprep.subr.bf16.mxu0 0
    %190 = vmatpush1.bf16.xpose.msra.mxu0 %v171
    %191 = vmatprep.subr.bf16.mxu0 0
    %192 = vmatpush1.bf16.xpose.msra.mxu0 %v174
    %193 = vmatprep.subr.bf16.mxu0 0
    %194 = vmatpush1.bf16.xpose.msra.mxu0 %v177
    %195 = vmatprep.subr.bf16.mxu0 0
    %196 = vmatpush1.bf16.xpose.msra.mxu0 0
    %197 = vmatprep.subr.bf16.mxu0 0
    %198 = vmatpush1.bf16.xpose.msra.mxu0 0
    %199 = vmatprep.subr.bf16.mxu0 0
    %200 = vmatpush1.bf16.xpose.msra.mxu0 0
    %201 = vmatprep.subr.bf16.mxu0 0
    %202 = vmatpush1.bf16.xpose.msra.mxu0 0
    %203 = vmatprep.subr.bf16.mxu0 0
    %204 = vmatpush1.bf16.xpose.msra.mxu0 0
    %205 = vmatprep.subr.bf16.mxu0 0
    %206 = vmatpush1.bf16.xpose.msra.mxu0 0
    %207 = vmatprep.subr.bf16.mxu0 0
    %208 = vmatpush1.bf16.xpose.msra.mxu0 0
    %209 = vmatprep.subr.bf16.mxu0 0
    %210 = vmatpush1.bf16.xpose.msra.mxu0 0
    %211 = vmatprep.mubr.bf16.mxu0 0
    %212 = vmatmul.mubr.bf16.gmra.mrb[0].mxu0 %v132
    %v213 = vpop.f32.mrb[0].mxu0
    %v214 = vadd.f32 0.0, %v213
    %v215 = vpop.f32.mrb[0].mxu0
    %v216 = vpop.f32.mrb[0].mxu0
    %v217 = vadd.f32 0.0, %v216
    %v218 = vpop.f32.mrb[0].mxu0
    %219 = vmatprep.mubr.bf16.mxu0 0
    %220 = vmatmul.mubr.bf16.gmra.mrb[0].mxu0 %v135
    %v221 = vpop.f32.mrb[0].mxu0
    %v222 = vadd.f32 0.0, %v221
    %v223 = vpop.f32.mrb[0].mxu0
    %v224 = vpop.f32.mrb[0].mxu0
    %v225 = vadd.f32 0.0, %v224
    %v226 = vpop.f32.mrb[0].mxu0
    %227 = vmatprep.mubr.bf16.mxu0 0
    %228 = vmatmul.mubr.bf16.gmra.mrb[0].mxu0 %v138
    %v229 = vpop.f32.mrb[0].mxu0
    %v230 = vadd.f32 0.0, %v229
    %v231 = vpop.f32.mrb[0].mxu0
    %v232 = vpop.f32.mrb[0].mxu0
    %v233 = vadd.f32 0.0, %v232
    %v234 = vpop.f32.mrb[0].mxu0
    %235 = vmatprep.mubr.bf16.mxu0 0
    %236 = vmatmul.mubr.bf16.gmra.mrb[0].mxu0 %v141
    %v237 = vpop.f32.mrb[0].mxu0
    %v238 = vadd.f32 0.0, %v237
    %v239 = vpop.f32.mrb[0].mxu0
    %v240 = vpop.f32.mrb[0].mxu0
    %v241 = vadd.f32 0.0, %v240
    %v242 = vpop.f32.mrb[0].mxu0
    %243 = vmatprep.mubr.bf16.mxu0 0
    %244 = vmatmul.mubr.bf16.gmra.mrb[0].mxu0 %v144
    %v245 = vpop.f32.mrb[0].mxu0
    %v246 = vadd.f32 0.0, %v245
    %v247 = vpop.f32.mrb[0].mxu0
    %v248 = vpop.f32.mrb[0].mxu0
    %v249 = vadd.f32 0.0, %v248
    %v250 = vpop.f32.mrb[0].mxu0
    %251 = vmatprep.mubr.bf16.mxu0 0
    %252 = vmatmul.mubr.bf16.gmra.mrb[0].mxu0 %v147
    %v253 = vpop.f32.mrb[0].mxu0
    %v254 = vadd.f32 0.0, %v253
    %v255 = vpop.f32.mrb[0].mxu0
    %v256 = vpop.f32.mrb[0].mxu0
    %v257 = vadd.f32 0.0, %v256
    %v258 = vpop.f32.mrb[0].mxu0
    %259 = vmatprep.mubr.bf16.mxu0 0
    %260 = vmatmul.mubr.bf16.gmra.mrb[0].mxu0 %v150
    %v261 = vpop.f32.mrb[0].mxu0
    %v262 = vadd.f32 0.0, %v261
    %v263 = vpop.f32.mrb[0].mxu0
    %v264 = vpop.f32.mrb[0].mxu0
    %v265 = vadd.f32 0.0, %v264
    %v266 = vpop.f32.mrb[0].mxu0
    %267 = vmatprep.mubr.bf16.mxu0 0
    %268 = vmatmul.mubr.bf16.gmra.mrb[0].mxu0 %v153
    %v269 = vpop.f32.mrb[0].mxu0
    %v270 = vadd.f32 0.0, %v269
    %v271 = vpop.f32.mrb[0].mxu0
    %v272 = vpop.f32.mrb[0].mxu0
    %v273 = vadd.f32 0.0, %v272
    %v274 = vpop.f32.mrb[0].mxu0
    %275 = vdwg.mxu0
    %v276 = vmul.f32 %v214, 2.0
    %v277 = vmul.f32 %v217, 2.0
    %v278 = vmul.f32 %v222, 2.0
    %v279 = vmul.f32 %v225, 2.0
    %v280 = vmul.f32 %v230, 2.0
    %v281 = vmul.f32 %v233, 2.0
    %v282 = vmul.f32 %v238, 2.0
    %v283 = vmul.f32 %v241, 2.0
    %v284 = vmul.f32 %v246, 2.0
    %v285 = vmul.f32 %v249, 2.0
    %v286 = vmul.f32 %v254, 2.0
    %v287 = vmul.f32 %v257, 2.0
    %v288 = vmul.f32 %v262, 2.0
    %v289 = vmul.f32 %v265, 2.0
    %v290 = vmul.f32 %v270, 2.0
    %v291 = vmul.f32 %v273, 2.0
    %v292 = vmul.f32 %v276, 1.442695
    %v293 = vpow.pop %v292
    %v294 = vmul.f32 %v277, 1.442695
    %v295 = vpow.pop %v294
    %v296 = vmul.f32 %v278, 1.442695
    %v297 = vpow.pop %v296
    %v298 = vmul.f32 %v279, 1.442695
    %v299 = vpow.pop %v298
    %v300 = vmul.f32 %v280, 1.442695
    %v301 = vpow.pop %v300
    %v302 = vmul.f32 %v281, 1.442695
    %v303 = vpow.pop %v302
    %v304 = vmul.f32 %v282, 1.442695
    %v305 = vpow.pop %v304
    %v306 = vmul.f32 %v283, 1.442695
    %v307 = vpow.pop %v306
    %v308 = vmul.f32 %v284, 1.442695
    %v309 = vpow.pop %v308
    %v310 = vmul.f32 %v285, 1.442695
    %v311 = vpow.pop %v310
    %v312 = vmul.f32 %v286, 1.442695
    %v313 = vpow.pop %v312
    %v314 = vmul.f32 %v287, 1.442695
    %v315 = vpow.pop %v314
    %v316 = vmul.f32 %v288, 1.442695
    %v317 = vpow.pop %v316
    %v318 = vmul.f32 %v289, 1.442695
    %v319 = vpow.pop %v318
    %v320 = vmul.f32 %v290, 1.442695
    %v321 = vpow.pop %v320
    %v322 = vmul.f32 %v291, 1.442695
    %v323 = vpow.pop %v322
    %s324 = smul.u32 0, 128
    %s325 = smul.u32 0, 128
    %s326 = sadd.s32 %s325, 128
    %p327 = scmp.le.s32.totalorder %s324, %s326
    %s328 = sadd.s32 %s324, 127
    %p329 = scmp.le.s32.totalorder %s325, %s328
    %p330 = pnand %p327, %p329
    %p331 = pneg %p330
    // Predicated region
    $region14: #{tpu_custom_call.1} parent=1 // pred_check
      _
    $region15: #{tpu_custom_call.1} parent=1 // pred_check_branch
      %333 = sbr.rel (%p330) target = $region17
    $region16: #{tpu_custom_call.1} parent=1 // pred_region
      %v334 = vlaneseq
      %v335 = vshrl.u32 %v334, 7
      %v336 = vadd.s32 %v335, 8
      %v337 = vadd.s32 %v335, 16
      %v338 = vadd.s32 %v335, 24
      %v339 = vadd.s32 %v335, 32
      %v340 = vadd.s32 %v335, 40
      %v341 = vadd.s32 %v335, 48
      %v342 = vadd.s32 %v335, 56
      %v343 = vadd.s32 %v335, 64
      %v344 = vadd.s32 %v335, 72
      %v345 = vadd.s32 %v335, 80
      %v346 = vadd.s32 %v335, 88
      %v347 = vadd.s32 %v335, 96
      %v348 = vadd.s32 %v335, 104
      %v349 = vadd.s32 %v335, 112
      %v350 = vadd.s32 %v335, 120
      %v351 = vstv %s324
      %v352 = vadd.s32 %v351, %v335
      %v353 = vadd.s32 %v351, %v336
      %v354 = vadd.s32 %v351, %v337
      %v355 = vadd.s32 %v351, %v338
      %v356 = vadd.s32 %v351, %v339
      %v357 = vadd.s32 %v351, %v340
      %v358 = vadd.s32 %v351, %v341
      %v359 = vadd.s32 %v351, %v342
      %v360 = vadd.s32 %v351, %v343
      %v361 = vadd.s32 %v351, %v344
      %v362 = vadd.s32 %v351, %v345
      %v363 = vadd.s32 %v351, %v346
      %v364 = vadd.s32 %v351, %v347
      %v365 = vadd.s32 %v351, %v348
      %v366 = vadd.s32 %v351, %v349
      %v367 = vadd.s32 %v351, %v350
      %v368 = vlaneseq
      %v369 = vand.u32 %v368, 127
      %v370 = vstv %s325
      %v371 = vadd.s32 %v370, %v369
      %vm372 = vcmp.ne.s32.totalorder %v352, %v371
      %vm373 = vcmp.ne.s32.totalorder %v353, %v371
      %vm374 = vcmp.ne.s32.totalorder %v354, %v371
      %vm375 = vcmp.ne.s32.totalorder %v355, %v371
      %vm376 = vcmp.ne.s32.totalorder %v356, %v371
      %vm377 = vcmp.ne.s32.totalorder %v357, %v371
      %vm378 = vcmp.ne.s32.totalorder %v358, %v371
      %vm379 = vcmp.ne.s32.totalorder %v359, %v371
      %vm380 = vcmp.ne.s32.totalorder %v360, %v371
      %vm381 = vcmp.ne.s32.totalorder %v361, %v371
      %vm382 = vcmp.ne.s32.totalorder %v362, %v371
      %vm383 = vcmp.ne.s32.totalorder %v363, %v371
      %vm384 = vcmp.ne.s32.totalorder %v364, %v371
      %vm385 = vcmp.ne.s32.totalorder %v365, %v371
      %vm386 = vcmp.ne.s32.totalorder %v366, %v371
      %vm387 = vcmp.ne.s32.totalorder %v367, %v371
      %v388 = vsel %vm372, %v293, 0.0
      %v389 = vsel %vm373, %v295, 0.0
      %v390 = vsel %vm374, %v297, 0.0
      %v391 = vsel %vm375, %v299, 0.0
      %v392 = vsel %vm376, %v301, 0.0
      %v393 = vsel %vm377, %v303, 0.0
      %v394 = vsel %vm378, %v305, 0.0
      %v395 = vsel %vm379, %v307, 0.0
      %v396 = vsel %vm380, %v309, 0.0
      %v397 = vsel %vm381, %v311, 0.0
      %v398 = vsel %vm382, %v313, 0.0
      %v399 = vsel %vm383, %v315, 0.0
      %v400 = vsel %vm384, %v317, 0.0
      %v401 = vsel %vm385, %v319, 0.0
      %v402 = vsel %vm386, %v321, 0.0
      %v403 = vsel %vm387, %v323, 0.0
      %v404 = vld [vmem:[#allocation2] sm:$0x1]
      %v405 = vadd.f32 %v388, %v389
      %v406 = vadd.f32 %v405, %v390
      %v407 = vadd.f32 %v406, %v391
      %v408 = vadd.f32 %v407, %v392
      %v409 = vadd.f32 %v408, %v393
      %v410 = vadd.f32 %v409, %v394
      %v411 = vadd.f32 %v410, %v395
      %v412 = vadd.f32 %v411, %v396
      %v413 = vadd.f32 %v412, %v397
      %v414 = vadd.f32 %v413, %v398
      %v415 = vadd.f32 %v414, %v399
      %v416 = vadd.f32 %v415, %v400
      %v417 = vadd.f32 %v416, %v401
      %v418 = vadd.f32 %v417, %v402
      %v419 = vadd.f32 %v418, %v403
      %v420 = vrot.slane %v419, 4
      %v421 = vadd.f32 %v419, %v420
      %v422 = vrot.slane %v421, 2
      %v423 = vadd.f32 %v421, %v422
      %v424 = vrot.slane %v423, 1
      %v425 = vadd.f32 %v423, %v424
      %v426 = vadd.f32 %v404, %v425
      %427 = vst [vmem:[#allocation2] sm:$0x1] %v426
      %v428 = vld [vmem:[#allocation2 + $0x1] sm:$0x1]
      %v429 = vadd.s32 %v371, 1
      %vm430 = vcmp.eq.s32.totalorder %v352, %v429
      %vm431 = vcmp.eq.s32.totalorder %v353, %v429
      %vm432 = vcmp.eq.s32.totalorder %v354, %v429
      %vm433 = vcmp.eq.s32.totalorder %v355, %v429
      %vm434 = vcmp.eq.s32.totalorder %v356, %v429
      %vm435 = vcmp.eq.s32.totalorder %v357, %v429
      %vm436 = vcmp.eq.s32.totalorder %v358, %v429
      %vm437 = vcmp.eq.s32.totalorder %v359, %v429
      %vm438 = vcmp.eq.s32.totalorder %v360, %v429
      %vm439 = vcmp.eq.s32.totalorder %v361, %v429
      %vm440 = vcmp.eq.s32.totalorder %v362, %v429
      %vm441 = vcmp.eq.s32.totalorder %v363, %v429
      %vm442 = vcmp.eq.s32.totalorder %v364, %v429
      %vm443 = vcmp.eq.s32.totalorder %v365, %v429
      %vm444 = vcmp.eq.s32.totalorder %v366, %v429
      %vm445 = vcmp.eq.s32.totalorder %v367, %v429
      %v446 = vsel %vm430, %v388, 0.0
      %v447 = vsel %vm431, %v389, 0.0
      %v448 = vsel %vm432, %v390, 0.0
      %v449 = vsel %vm433, %v391, 0.0
      %v450 = vsel %vm434, %v392, 0.0
      %v451 = vsel %vm435, %v393, 0.0
      %v452 = vsel %vm436, %v394, 0.0
      %v453 = vsel %vm437, %v395, 0.0
      %v454 = vsel %vm438, %v396, 0.0
      %v455 = vsel %vm439, %v397, 0.0
      %v456 = vsel %vm440, %v398, 0.0
      %v457 = vsel %vm441, %v399, 0.0
      %v458 = vsel %vm442, %v400, 0.0
      %v459 = vsel %vm443, %v401, 0.0
      %v460 = vsel %vm444, %v402, 0.0
      %v461 = vsel %vm445, %v403, 0.0
      %v462 = vadd.f32 %v446, %v447
      %v463 = vadd.f32 %v462, %v448
      %v464 = vadd.f32 %v463, %v449
      %v465 = vadd.f32 %v464, %v450
      %v466 = vadd.f32 %v465, %v451
      %v467 = vadd.f32 %v466, %v452
      %v468 = vadd.f32 %v467, %v453
      %v469 = vadd.f32 %v468, %v454
      %v470 = vadd.f32 %v469, %v455
      %v471 = vadd.f32 %v470, %v456
      %v472 = vadd.f32 %v471, %v457
      %v473 = vadd.f32 %v472, %v458
      %v474 = vadd.f32 %v473, %v459
      %v475 = vadd.f32 %v474, %v460
      %v476 = vadd.f32 %v475, %v461
      %v477 = vrot.slane %v476, 4
      %v478 = vadd.f32 %v476, %v477
      %v479 = vrot.slane %v478, 2
      %v480 = vadd.f32 %v478, %v479
      %v481 = vrot.slane %v480, 1
      %v482 = vadd.f32 %v480, %v481
      %v483 = vadd.f32 %v428, %v482
      %484 = vst [vmem:[#allocation2 + $0x1] sm:$0x1] %v483
    $region17: #{tpu_custom_call.1} parent=1 // pred_fallthru
      _
    %p485 = pneg %p331
    // Predicated region
    $region18: #{tpu_custom_call.1} parent=1 // pred_check
      _
    $region19: #{tpu_custom_call.1} parent=1 // pred_check_branch
      %487 = sbr.rel (%p331) target = $region21
    $region20: #{tpu_custom_call.1} parent=1 // pred_region
      %v488 = vld [vmem:[#allocation2] sm:$0x1]
      %v489 = vadd.f32 %v293, %v295
      %v490 = vadd.f32 %v489, %v297
      %v491 = vadd.f32 %v490, %v299
      %v492 = vadd.f32 %v491, %v301
      %v493 = vadd.f32 %v492, %v303
      %v494 = vadd.f32 %v493, %v305
      %v495 = vadd.f32 %v494, %v307
      %v496 = vadd.f32 %v495, %v309
      %v497 = vadd.f32 %v496, %v311
      %v498 = vadd.f32 %v497, %v313
      %v499 = vadd.f32 %v498, %v315
      %v500 = vadd.f32 %v499, %v317
      %v501 = vadd.f32 %v500, %v319
      %v502 = vadd.f32 %v501, %v321
      %v503 = vadd.f32 %v502, %v323
      %v504 = vrot.slane %v503, 4
      %v505 = vadd.f32 %v503, %v504
      %v506 = vrot.slane %v505, 2
      %v507 = vadd.f32 %v505, %v506
      %v508 = vrot.slane %v507, 1
      %v509 = vadd.f32 %v507, %v508
      %v510 = vadd.f32 %v488, %v509
      %511 = vst [vmem:[#allocation2] sm:$0x1] %v510
    $region21: #{tpu_custom_call.1} parent=1 // pred_fallthru
      _
    // Predicated region
    $region22: #{tpu_custom_call.1} parent=1 // pred_check
      _
    $region23: #{tpu_custom_call.1} parent=1 // pred_check_branch
      %513 = sbr.rel (0) target = $region25
    $region24: #{tpu_custom_call.1} parent=1 // pred_region
      %s515 = ssub.s32 32, 32
      %516 = vsyncadd [#allocation3], %s515
      %s518 = sshll.u32 [#allocation2], 4
      %s519 = int_to_ptr.vmem [resolvable:$true] %s518
      %521 = dma.vmem_to_hbm [thread:$0]  %s519, 32, %s2, [#allocation3]
    $region25: #{tpu_custom_call.1} parent=1 // pred_fallthru
      _
    // Predicated region
    $region26: #{tpu_custom_call.1} parent=1 // pred_check
      _
    $region27: #{tpu_custom_call.1} parent=1 // pred_check_branch
      %523 = sbr.rel (0) target = $region29
    $region28: #{tpu_custom_call.1} parent=1 // pred_region
      %524 = dma.done [#allocation3], 32
    $region29: #{tpu_custom_call.1} parent=1 // pred_fallthru
      _
    %525 = vsyncpa [#allocation3], 1

</llo_original>
